<compile_context>
chip_gen: v7x
topology: tpu7x:2x2x1
jax: 0.10.0
libtpu: 0.0.40
codegen_flags: <defaults>
</compile_context>

<pallas_src>
import functools
from collections import namedtuple

import jax
import jax.numpy as jnp
from jax.experimental import pallas as pl
from jax.experimental.pallas import tpu as pltpu


# Loss terms the fused Pallas kernel knows how to compute.
CROSS_ENTROPY = "cross_entropy"
BRIER = "brier"

KernelLoss = namedtuple("KernelLoss", ["kind", "weight"])   # fused on-TPU
WeightedLoss = namedtuple("WeightedLoss", ["f", "weight"])  # generic python callable


# ----------------------------- Pallas kernel -------------------------------

def _fused_ce_brier_kernel(logits_ref, labels_ref, out_ref, *,
                           w_ce, w_brier, batch, tile_b, tiles_per_core,
                           needs_row_mask):
    """One batch tile of  w_ce*CE + w_brier*Brier, accumulated into out_ref.

    logits_ref : [TB, C]  native dtype, cast to f32 in-kernel
    labels_ref : [TB, 1]  int32 class ids
    out_ref    : [1, 1]   f32, resident per-core partial sum (divided by B
                          and reduced across cores in the wrapper)
    """
    c = pl.program_id(0)   # parallel (per-core) axis
    i = pl.program_id(1)   # arbitrary (reduction) axis

    @pl.when(i == 0)
    def _init():
        out_ref[...] = jnp.zeros_like(out_ref)

    x = logits_ref[...].astype(jnp.float32)                    # [TB, C]
    tb, nc = x.shape

    # Single masked lane-reduce shared by CE and Brier: x_label = x[label].
    class_ids = jax.lax.broadcasted_iota(jnp.int32, (tb, nc), 1)
    is_label = class_ids == labels_ref[...]                     # [TB, C] bool
    x_label = jnp.sum(jnp.where(is_label, x, 0.0), axis=-1, keepdims=True)

    # Shared softmax statistics (no softmax probabilities materialized).
    m = jnp.max(x, axis=-1, keepdims=True)                      # [TB, 1]
    e = jnp.exp(x - m)                                          # [TB, C]
    s = jnp.sum(e, axis=-1, keepdims=True)                      # [TB, 1]

    contrib = jnp.zeros((tb, 1), jnp.float32)
    if w_ce:     # static python branch -> dead code removed when weight is 0
        lse = jnp.log(s) + m
        contrib = contrib + w_ce * (lse - x_label)              # CE rows
    if w_brier:
        # sum((p - t)^2) = sum(e^2)/s^2 - 2*exp(x_label - m)/s + 1
        inv_s = pl.reciprocal(s, approx=True)                   # EUP slot
        sum_e2 = jnp.sum(e * e, axis=-1, keepdims=True)
        p_label = jnp.exp(x_label - m) * inv_s
        contrib = contrib + w_brier * (sum_e2 * inv_s * inv_s
                                       - 2.0 * p_label + 1.0)

    if needs_row_mask:
        # Cheap [TB,1] mask: quarantines padded / clamped rows' garbage.
        row0 = (c * tiles_per_core + i) * tile_b
        row_ids = row0 + jax.lax.broadcasted_iota(jnp.int32, (tb, 1), 0)
        contrib = jnp.where(row_ids < batch, contrib, 0.0)

    out_ref[...] += jnp.sum(contrib, keepdims=True)             # (1, 1)


# ------------------------------ host wrapper --------------------------------

def _round_up(x, m):
    return (x + m - 1) // m * m


def _vmem_capacity_bytes():
    """Physical VMEM of the attached chip (conservative fallback = v7x)."""
    try:
        return int(pltpu.get_tpu_info().vmem_capacity_bytes)
    except Exception:
        return 64 << 20


def _pick_tile_b(batch, n_classes, itemsize, budget_bytes):
    """Largest sublane-packed batch tile whose real VMEM footprint fits budget.

    Footprint per row: 2 double-buffered input buffers in native dtype,
    ~4 live f32 [TB,C] intermediates (x, e, e*e, temporaries), plus the
    lane-padded [TB,1]->[TB,128] labels block (2 buffers, i32).
    """
    lane_c = _round_up(n_classes, 128)
    per_row = 2 * lane_c * itemsize + 4 * lane_c * 4 + 2 * 128 * 4
    pack = max(8, 32 // max(itemsize, 1))      # f32->8, bf16->16, int8/fp8->32
    tb = (budget_bytes // per_row) // pack * pack
    tb = max(pack, int(tb))
    return int(min(tb, _round_up(batch, pack)))


def fused_ce_brier_loss(net_output, labels, w_ce, w_brier, *,
                        tile_b=None, num_partials=None):
    """Weighted cross-entropy + Brier score as a single Pallas call -> scalar."""
    batch, n_classes = net_output.shape
    itemsize = net_output.dtype.itemsize

    vmem_cap = _vmem_capacity_bytes()
    # ~40% of physical VMEM for this kernel's footprint: ~51 MiB on v5e/v6e,
    # ~25 MiB on v7x.  Explicit vmem_limit_bytes below gives headroom on top.
    budget = max(8 << 20, int(vmem_cap * 0.4))
    if tile_b is None:
        tile_b = _pick_tile_b(batch, n_classes, itemsize, budget)

    n_tiles = pl.cdiv(batch, tile_b)
    if num_partials is None:
        # One resident accumulator per TensorCore on v7x; harmless elsewhere.
        num_partials = 2 if n_tiles >= 2 else 1
    tiles_per_core = pl.cdiv(n_tiles, num_partials)
    needs_row_mask = (num_partials * tiles_per_core * tile_b != batch)

    labels2d = labels.reshape(batch, 1).astype(jnp.int32)
    last_blk = n_tiles - 1

    def row_block(c, i):
        # Clamp so grid steps beyond the last real tile re-read a valid block
        # (their rows are masked out by the in-kernel row mask).
        return jnp.minimum(c * tiles_per_core + i, last_blk)

    kernel = functools.partial(
        _fused_ce_brier_kernel,
        w_ce=float(w_ce), w_brier=float(w_brier),
        batch=batch, tile_b=tile_b, tiles_per_core=tiles_per_core,
        needs_row_mask=needs_row_mask)

    n_terms = int(bool(w_ce)) + int(bool(w_brier))
    cost = pl.CostEstimate(
        flops=int((5 + 2 * n_terms) * batch * n_classes),
        transcendentals=int(batch * n_classes + 3 * batch),
        bytes_accessed=int(batch * n_classes * itemsize + 4 * batch
                           + 4 * num_partials))

    partials = pl.pallas_call(
        kernel,
        out_shape=jax.ShapeDtypeStruct((num_partials, 1), jnp.float32),
        grid=(num_partials, tiles_per_core),
        in_specs=[
            pl.BlockSpec((tile_b, n_classes), lambda c, i: (row_block(c, i), 0)),
            pl.BlockSpec((tile_b, 1), lambda c, i: (row_block(c, i), 0)),
        ],
        out_specs=pl.BlockSpec((1, 1), lambda c, i: (c, 0)),
        compiler_params=pltpu.CompilerParams(
            dimension_semantics=("parallel", "arbitrary"),
            vmem_limit_bytes=int(min(vmem_cap * 3 // 4, 100 << 20))),
        cost_estimate=cost,
    )(net_output, labels2d)

    # Reduce per-core partials in f32 and take the mean over the true batch.
    return jnp.sum(partials) / batch


# ------------------------------ MultiTaskLoss --------------------------------

class MultiTaskLoss:
    """Faithful port of dpn.criterions.MultiTaskLoss.forward.

    `KernelLoss` terms (cross-entropy / Brier) with non-zero weight are fused
    into a single Pallas kernel; any other `WeightedLoss` callables go through
    the original python accumulation loop. Zero-weight losses are skipped,
    matching `if loss.weight:` in the PyTorch code.
    """

    def __init__(self, weighted_losses):
        self.losses = weighted_losses

    def __call__(self, net_output, labels, **kwargs):
        accumulator = 0
        w_ce = 0.0
        w_brier = 0.0
        for loss in self.losses:
            if not loss.weight:                      # faithful zero-weight skip
                continue
            if isinstance(loss, KernelLoss):
                if loss.kind == CROSS_ENTROPY:
                    w_ce += loss.weight
                elif loss.kind == BRIER:
                    w_brier += loss.weight
                else:
                    raise ValueError(f"unknown kernel loss kind: {loss.kind}")
            else:
                accumulator += loss.weight * loss.f(net_output, labels, **kwargs)
        if w_ce or w_brier:
            accumulator += fused_ce_brier_loss(net_output, labels, w_ce, w_brier)
        return accumulator


# ---------------------------------- main ------------------------------------

if __name__ == "__main__":
    key = jax.random.PRNGKey(0)
    k_logits, k_labels = jax.random.split(key)

    # Small but representative: lane-dense C (multiple of 128), ragged batch
    # (B=20 so the last tile is partially padded), bf16 logits (native dtype).
    B, C = 20, 128
    net_output = jax.random.normal(
        k_logits, (B, C), dtype=jnp.float32).astype(jnp.bfloat16)
    labels = jax.random.randint(k_labels, (B,), 0, C, dtype=jnp.int32)

    def _unused_loss(net_output, labels, **kwargs):
        raise RuntimeError("zero-weight loss must be skipped")

    criterion = MultiTaskLoss([
        KernelLoss(kind=CROSS_ENTROPY, weight=1.0),
        KernelLoss(kind=BRIER, weight=0.5),
        WeightedLoss(f=_unused_loss, weight=0.0),  # exercises `if loss.weight:`
    ])

    # Single fused kernel call (auto tile, single partial) ...
    total = jax.block_until_ready(criterion(net_output, labels))
    # ... and a multi-tile / multi-partial variant (tile_b=16 -> 2 row blocks,
    # 2 resident partial accumulators, masked padded rows).
    total_tiled = jax.block_until_ready(
        fused_ce_brier_loss(net_output, labels, 1.0, 0.5, tile_b=16))

    # Pure-JAX reference for the same weighted sum.
    x32 = net_output.astype(jnp.float32)
    onehot = jax.nn.one_hot(labels, C, dtype=jnp.float32)
    logp = jax.nn.log_softmax(x32, axis=-1)
    ce_ref = jnp.mean(-jnp.sum(onehot * logp, axis=-1))
    p = jax.nn.softmax(x32, axis=-1)
    brier_ref = jnp.mean(jnp.sum((p - onehot) ** 2, axis=-1))
    ref = 1.0 * ce_ref + 0.5 * brier_ref

    assert jnp.allclose(total, ref, rtol=3e-3, atol=3e-3), (total, ref)
    assert jnp.allclose(total_tiled, ref, rtol=3e-3, atol=3e-3), (total_tiled, ref)
    print("KERNEL_OK")
</pallas_src>

<mosaic_0001>
module attributes {stable_mosaic.version = 11 : i64} {
  func.func @_fused_ce_brier_kernel(%arg0: i32, %arg1: i32, %arg2: memref<32x128xbf16, #tpu.memory_space<vmem>>, %arg3: memref<32x1xi32, #tpu.memory_space<vmem>>, %arg4: memref<1x1xf32, #tpu.memory_space<vmem>>) attributes {dimension_semantics = [#tpu.dimension_semantics<parallel>, #tpu.dimension_semantics<arbitrary>], iteration_bounds = array<i64: 1, 1>, scalar_prefetch = 0 : i64, scratch_operands = 0 : i64, tpu.core_type = #tpu.core_type<tc>, window_params = [{transform_indices = @transform_0, window_bounds = array<i64: 32, 128>}, {transform_indices = @transform_1, window_bounds = array<i64: 32, 1>}, {transform_indices = @transform_2, window_bounds = array<i64: 1, 1>}]} {
    %c0_i32 = arith.constant 0 : i32
    %0 = arith.cmpi eq, %arg1, %c0_i32 : i32
    %1 = arith.extui %0 : i1 to i32
    %c0_i32_0 = arith.constant 0 : i32
    %2 = arith.cmpi ne, %1, %c0_i32_0 : i32
    scf.if %2 {
      %cst_19 = arith.constant 0.000000e+00 : f32
      %62 = vector.broadcast %cst_19 : f32 to vector<1x1xf32>
      %c0_20 = arith.constant 0 : index
      %c0_21 = arith.constant 0 : index
      %63 = vector.load %arg4[%c0_20, %c0_21] : memref<1x1xf32, #tpu.memory_space<vmem>>, vector<1x1xf32>
      tpu.vector_store %arg4[%c0_20, %c0_21], %62 {strides = array<i32>} : memref<1x1xf32, #tpu.memory_space<vmem>>, vector<1x1xf32>,
    } else {
    }
    %c0 = arith.constant 0 : index
    %c0_1 = arith.constant 0 : index
    %3 = vector.load %arg2[%c0, %c0_1] : memref<32x128xbf16, #tpu.memory_space<vmem>>, vector<32x128xbf16>
    %4 = arith.extf %3 : vector<32x128xbf16> to vector<32x128xf32>
    %5 = tpu.iota {dimensions = array<i32: 1>} : vector<32x128xi32>
    %c0_2 = arith.constant 0 : index
    %c0_3 = arith.constant 0 : index
    %6 = vector.load %arg3[%c0_2, %c0_3] : memref<32x1xi32, #tpu.memory_space<vmem>>, vector<32x1xi32>
    %7 = vector.broadcast %6 : vector<32x1xi32> to vector<32x128xi32>
    %8 = arith.cmpi eq, %5, %7 : vector<32x128xi32>
    %cst = arith.constant 0.000000e+00 : f32
    %9 = vector.broadcast %cst : f32 to vector<32x128xf32>
    %10 = arith.select %8, %4, %9 : vector<32x128xi1>, vector<32x128xf32>
    %cst_4 = arith.constant dense<0.000000e+00> : vector<32xf32>
    %11 = vector.multi_reduction <add>, %10, %cst_4 [1] : vector<32x128xf32> to vector<32xf32>
    %12 = vector.shape_cast %11 : vector<32xf32> to vector<32x1xf32>
    %cst_5 = arith.constant dense<0xFF800000> : vector<32xf32>
    %13 = vector.multi_reduction <maximumf>, %4, %cst_5 [1] : vector<32x128xf32> to vector<32xf32>
    %14 = vector.shape_cast %13 : vector<32xf32> to vector<32x1xf32>
    %15 = vector.broadcast %14 : vector<32x1xf32> to vector<32x128xf32>
    %16 = arith.subf %4, %15 : vector<32x128xf32>
    %17 = math.exp %16 : vector<32x128xf32>
    %cst_6 = arith.constant dense<0.000000e+00> : vector<32xf32>
    %18 = vector.multi_reduction <add>, %17, %cst_6 [1] : vector<32x128xf32> to vector<32xf32>
    %19 = vector.shape_cast %18 : vector<32xf32> to vector<32x1xf32>
    %cst_7 = arith.constant 0.000000e+00 : f32
    %20 = vector.broadcast %cst_7 : f32 to vector<32x1xf32>
    %21 = math.log %19 : vector<32x1xf32>
    %22 = arith.addf %21, %14 : vector<32x1xf32>
    %23 = arith.subf %22, %12 : vector<32x1xf32>
    %cst_8 = arith.constant 1.000000e+00 : f32
    %24 = vector.broadcast %cst_8 : f32 to vector<32x1xf32>
    %25 = arith.mulf %24, %23 : vector<32x1xf32>
    %26 = arith.addf %20, %25 : vector<32x1xf32>
    %27 = tpu.reciprocal %19 {approx = true} : vector<32x1xf32> -> vector<32x1xf32>
    %28 = arith.mulf %17, %17 : vector<32x128xf32>
    %cst_9 = arith.constant dense<0.000000e+00> : vector<32xf32>
    %29 = vector.multi_reduction <add>, %28, %cst_9 [1] : vector<32x128xf32> to vector<32xf32>
    %30 = vector.shape_cast %29 : vector<32xf32> to vector<32x1xf32>
    %31 = arith.subf %12, %14 : vector<32x1xf32>
    %32 = math.exp %31 : vector<32x1xf32>
    %33 = arith.mulf %32, %27 : vector<32x1xf32>
    %34 = arith.mulf %30, %27 : vector<32x1xf32>
    %35 = arith.mulf %34, %27 : vector<32x1xf32>
    %cst_10 = arith.constant 2.000000e+00 : f32
    %36 = vector.broadcast %cst_10 : f32 to vector<32x1xf32>
    %37 = arith.mulf %36, %33 : vector<32x1xf32>
    %38 = arith.subf %35, %37 : vector<32x1xf32>
    %cst_11 = arith.constant 1.000000e+00 : f32
    %39 = vector.broadcast %cst_11 : f32 to vector<32x1xf32>
    %40 = arith.addf %38, %39 : vector<32x1xf32>
    %cst_12 = arith.constant 5.000000e-01 : f32
    %41 = vector.broadcast %cst_12 : f32 to vector<32x1xf32>
    %42 = arith.mulf %41, %40 : vector<32x1xf32>
    %43 = arith.addf %26, %42 : vector<32x1xf32>
    %c1_i32 = arith.constant 1 : i32
    %44 = arith.muli %arg0, %c1_i32 : i32
    %45 = arith.addi %44, %arg1 : i32
    %c32_i32 = arith.constant 32 : i32
    %46 = arith.muli %45, %c32_i32 : i32
    %47 = tpu.iota {dimensions = array<i32: 0>} : vector<32x1xi32>
    %48 = vector.broadcast %46 : i32 to vector<32x1xi32>
    %49 = arith.addi %48, %47 : vector<32x1xi32>
    %c20_i32 = arith.constant 20 : i32
    %50 = vector.broadcast %c20_i32 : i32 to vector<32x1xi32>
    %51 = arith.cmpi slt, %49, %50 : vector<32x1xi32>
    %cst_13 = arith.constant 0.000000e+00 : f32
    %52 = vector.broadcast %cst_13 : f32 to vector<32x1xf32>
    %53 = arith.select %51, %43, %52 : vector<32x1xi1>, vector<32x1xf32>
    %c0_14 = arith.constant 0 : index
    %c0_15 = arith.constant 0 : index
    %54 = vector.load %arg4[%c0_14, %c0_15] : memref<1x1xf32, #tpu.memory_space<vmem>>, vector<1x1xf32>
    %55 = vector.shape_cast %53 : vector<32x1xf32> to vector<1x32x1xf32>
    %cst_16 = arith.constant dense<0.000000e+00> : vector<1xf32>
    %56 = vector.multi_reduction <add>, %55, %cst_16 [1, 2] : vector<1x32x1xf32> to vector<1xf32>
    %57 = vector.shape_cast %56 : vector<1xf32> to vector<1x1x1xf32>
    %58 = vector.extract %57[0, 0, 0] : f32 from vector<1x1x1xf32>
    %59 = vector.broadcast %58 : f32 to vector<1x1xf32>
    %60 = arith.addf %54, %59 : vector<1x1xf32>
    %c0_17 = arith.constant 0 : index
    %c0_18 = arith.constant 0 : index
    %61 = vector.load %arg4[%c0_17, %c0_18] : memref<1x1xf32, #tpu.memory_space<vmem>>, vector<1x1xf32>
    tpu.vector_store %arg4[%c0_17, %c0_18], %60 {strides = array<i32>} : memref<1x1xf32, #tpu.memory_space<vmem>>, vector<1x1xf32>,
    return
  }
  func.func @transform_0(%arg0: i32, %arg1: i32) -> (i32, i32) {
    %c1_i32 = arith.constant 1 : i32
    %0 = arith.muli %arg0, %c1_i32 : i32
    %1 = arith.addi %0, %arg1 : i32
    %c0_i32 = arith.constant 0 : i32
    %2 = arith.minsi %1, %c0_i32 : i32
    %c0_i32_0 = arith.constant 0 : i32
    %c0_i32_1 = arith.constant 0 : i32
    return %2, %c0_i32_0 : i32, i32
  }
  func.func @transform_1(%arg0: i32, %arg1: i32) -> (i32, i32) {
    %c1_i32 = arith.constant 1 : i32
    %0 = arith.muli %arg0, %c1_i32 : i32
    %1 = arith.addi %0, %arg1 : i32
    %c0_i32 = arith.constant 0 : i32
    %2 = arith.minsi %1, %c0_i32 : i32
    %c0_i32_0 = arith.constant 0 : i32
    %c0_i32_1 = arith.constant 0 : i32
    return %2, %c0_i32_0 : i32, i32
  }
  func.func @transform_2(%arg0: i32, %arg1: i32) -> (i32, i32) {
    %c0_i32 = arith.constant 0 : i32
    %c0_i32_0 = arith.constant 0 : i32
    return %arg0, %c0_i32 : i32, i32
  }
}

</mosaic_0001>

<llo_original>
// kernel: tpu_custom_call.1
$region0: #{tpu_custom_call.1}
  #allocation0 [shape = 'u32[]', space=smem, size = 0x4, offset = 0x4, fixed_abs, tag = 'smem constant byte address 0x4 - core index']
  #allocation1 [shape = 'u32[144,128]{1,0:T(1,128)}', space=vmem, size = 0x12000, scoped, tag = 'internal scratch']
  %s0 = inlined_call_operand.vmem [shape: bf16[20,128], index: 0, kind: input, shape index: {}]
  %s1 = inlined_call_operand.vmem [shape: s32[20,1], index: 1, kind: input, shape index: {}]
  %s2 = inlined_call_operand.hbm [shape: f32[1,1], index: 2, kind: output, shape index: {}]
  %s3 = sld [smem:[#allocation0]]
  $region22: #{tpu_custom_call.1} parent=0
    _
  %s5 = ssub.s32 1, %s3
  %s6 = scalar_select 0, %s5, %s3
  $region1: #{tpu_custom_call.1} parent=0
    #allocation2 [shape = 'u8[512]{0}', space=vmem, size = 0x400, scoped, tag = 'output window, operand 0, single buffered']
    #allocation3 [shape = 's32[1]{0}', space=sflag, size = 0x4, scoped, tag = 'scoped memory for tpu_custom_call.1']
    %7 = vsyncpa [#allocation3], 0
    // Predicated region
    $region2: #{tpu_custom_call.1} parent=1 // pred_check
      _
    $region3: #{tpu_custom_call.1} parent=1 // pred_check_branch
      %9 = sbr.rel (0) target = $region5
    $region4: #{tpu_custom_call.1} parent=1 // pred_region
      %s10 = sadd.s32 0, 0
      %p11 = scmp.lt.s32.totalorder %s10, 0
      %s12 = scalar_select %p11, %s10, 0
      %s13 = smul.u32 4, %s12
      %s14 = ssub.s32 3, %s13
      %s15 = smul.u32 64, %s14
      %p16 = scmp.lt.s32.totalorder %s13, 2
      %s17 = scalar_select %p16, %s13, 2
      %s18 = smul.addr %s17, 4
      %s19 = scalar_lea.vmem %s0, %s18
      %s20 = sadd.s32 0, 0
      %p21 = scmp.lt.s32.totalorder %s20, 0
      %s22 = scalar_select %p21, %s20, 0
      %s23 = smul.u32 4, %s22
      %s24 = ssub.s32 3, %s23
      %s25 = smul.u32 64, %s24
    $region5: #{tpu_custom_call.1} parent=1 // pred_fallthru
      _
    // Predicated region
    $region6: #{tpu_custom_call.1} parent=1 // pred_check
      _
    $region7: #{tpu_custom_call.1} parent=1 // pred_check_branch
      %27 = sbr.rel (0) target = $region9
    $region8: #{tpu_custom_call.1} parent=1 // pred_region
      %s28 = sadd.s32 0, 0
      %p29 = scmp.lt.s32.totalorder %s28, 0
      %s30 = scalar_select %p29, %s28, 0
      %s31 = smul.u32 4, %s30
      %s32 = ssub.s32 3, %s31
      %s33 = smul.u32 128, %s32
      %p34 = scmp.lt.s32.totalorder %s31, 2
      %s35 = scalar_select %p34, %s31, 2
      %s36 = smul.addr %s35, 8
      %s37 = scalar_lea.vmem %s1, %s36
      %s38 = sadd.s32 0, 0
      %p39 = scmp.lt.s32.totalorder %s38, 0
      %s40 = scalar_select %p39, %s38, 0
      %s41 = smul.u32 4, %s40
      %s42 = ssub.s32 3, %s41
      %s43 = smul.u32 128, %s42
    $region9: #{tpu_custom_call.1} parent=1 // pred_fallthru
      _
    %s44 = sadd.s32 0, 0
    %p45 = scmp.lt.s32.totalorder %s44, 0
    %s46 = scalar_select %p45, %s44, 0
    %s47 = smul.u32 4, %s46
    %s48 = ssub.s32 3, %s47
    %s49 = smul.u32 64, %s48
    %p50 = scmp.lt.s32.totalorder %s47, 2
    %s51 = scalar_select %p50, %s47, 2
    %s52 = smul.addr %s51, 4
    %s53 = scalar_lea.vmem %s0, %s52
    %s54 = sadd.s32 0, 0
    %p55 = scmp.lt.s32.totalorder %s54, 0
    %s56 = scalar_select %p55, %s54, 0
    %s57 = smul.u32 4, %s56
    %s58 = ssub.s32 3, %s57
    %s59 = smul.u32 128, %s58
    %p60 = scmp.lt.s32.totalorder %s57, 2
    %s61 = scalar_select %p60, %s57, 2
    %s62 = smul.addr %s61, 8
    %s63 = scalar_lea.vmem %s1, %s62
    %s64 = sadd.s32 0, 0
    %p65 = scmp.lt.s32.totalorder %s64, 0
    %s66 = scalar_select %p65, %s64, 0
    %s67 = smul.u32 4, %s66
    %s68 = ssub.s32 3, %s67
    %s69 = smul.u32 64, %s68
    %p70 = scmp.lt.s32.totalorder %s67, 2
    %s71 = scalar_select %p70, %s67, 2
    %s72 = smul.addr %s71, 4
    %s73 = scalar_lea.vmem %s0, %s72
    %s74 = sadd.s32 0, 0
    %p75 = scmp.lt.s32.totalorder %s74, 0
    %s76 = scalar_select %p75, %s74, 0
    %s77 = smul.u32 4, %s76
    %s78 = ssub.s32 3, %s77
    %s79 = smul.u32 64, %s78
    %s80 = sadd.s32 0, 0
    %p81 = scmp.lt.s32.totalorder %s80, 0
    %s82 = scalar_select %p81, %s80, 0
    %s83 = smul.u32 4, %s82
    %s84 = ssub.s32 3, %s83
    %s85 = smul.u32 128, %s84
    %p86 = scmp.lt.s32.totalorder %s83, 2
    %s87 = scalar_select %p86, %s83, 2
    %s88 = smul.addr %s87, 8
    %s89 = scalar_lea.vmem %s1, %s88
    %s90 = sadd.s32 0, 0
    %p91 = scmp.lt.s32.totalorder %s90, 0
    %s92 = scalar_select %p91, %s90, 0
    %s93 = smul.u32 4, %s92
    %s94 = ssub.s32 3, %s93
    %s95 = smul.u32 128, %s94
    %p96 = scmp.eq.s32.totalorder 0, 0
    // Predicated region
    $region10: #{tpu_custom_call.1} parent=1 // pred_check
      %p97 = pneg %p96
    $region11: #{tpu_custom_call.1} parent=1 // pred_check_branch
      %99 = sbr.rel (%p97) target = $region13
    $region12: #{tpu_custom_call.1} parent=1 // pred_region
      %vm100 = vcmask 0
      %101 = vst.msk [vmem:[#allocation2] sm:$0x1] %vm100, 0.0
    $region13: #{tpu_custom_call.1} parent=1 // pred_fallthru
      _
    %v102 = vld [vmem:[%s73] sm:$0xf]
    %v103 = vld [vmem:[%s73 + $0x4] sm:$0xf]
    %v104 = vld [vmem:[%s73 + $0x8] sm:$0xf]
    %v105 = vld [vmem:[%s73 + $0xc] sm:$0xf]
    %v106 = vunpack.c.l.bf16 %v102
    %v107 = vunpack.c.l.bf16 %v103
    %v108 = vunpack.c.l.bf16 %v104
    %v109 = vunpack.c.l.bf16 %v105
    %v110 = vlaneseq
    %v111 = vand.u32 %v110, 127
    %v112 = vld [vmem:[%s89] sm:$0xff]
    %v113 = vld [vmem:[%s89 + $0x8] sm:$0xff]
    %v114 = vld [vmem:[%s89 + $0x10] sm:$0xff]
    %v115 = vld [vmem:[%s89 + $0x18] sm:$0xff]
    %116 = vset.pattern.permute.xlu0 0
    %117 = vperm.xlu0 %116, %v112
    %v118 = vpop.permute.xlu0 %117
    %119 = vset.pattern.permute.xlu0 0
    %120 = vperm.xlu0 %119, %v113
    %v121 = vpop.permute.xlu0 %120
    %122 = vset.pattern.permute.xlu0 0
    %123 = vperm.xlu0 %122, %v114
    %v124 = vpop.permute.xlu0 %123
    %125 = vset.pattern.permute.xlu0 0
    %126 = vperm.xlu0 %125, %v115
    %v127 = vpop.permute.xlu0 %126
    %vm128 = vcmp.eq.s32.totalorder %v111, %v118
    %vm129 = vcmp.eq.s32.totalorder %v111, %v121
    %vm130 = vcmp.eq.s32.totalorder %v111, %v124
    %vm131 = vcmp.eq.s32.totalorder %v111, %v127
    %v132 = vsel %vm128, %v106, 0.0
    %v133 = vsel %vm129, %v107, 0.0
    %v134 = vsel %vm130, %v108, 0.0
    %v135 = vsel %vm131, %v109, 0.0
    %136 = vadd.xlane.f32.xlu0 %v132
    %v137 = vpop.xlane.xlu0 %136
    %138 = vadd.xlane.f32.xlu0 %v133
    %v139 = vpop.xlane.xlu0 %138
    %140 = vadd.xlane.f32.xlu0 %v134
    %v141 = vpop.xlane.xlu0 %140
    %142 = vadd.xlane.f32.xlu0 %v135
    %v143 = vpop.xlane.xlu0 %142
    %144 = vmax.xlane.f32.xlu0 %v106
    %v145 = vpop.xlane.xlu0 %144
    %146 = vmax.xlane.f32.xlu0 %v107
    %v147 = vpop.xlane.xlu0 %146
    %148 = vmax.xlane.f32.xlu0 %v108
    %v149 = vpop.xlane.xlu0 %148
    %150 = vmax.xlane.f32.xlu0 %v109
    %v151 = vpop.xlane.xlu0 %150
    %v152 = vsub.f32 %v106, %v145
    %v153 = vsub.f32 %v107, %v147
    %v154 = vsub.f32 %v108, %v149
    %v155 = vsub.f32 %v109, %v151
    %v156 = vmul.f32 %v152, 1.442695
    %v157 = vpow.pop %v156
    %v158 = vmul.f32 %v153, 1.442695
    %v159 = vpow.pop %v158
    %v160 = vmul.f32 %v154, 1.442695
    %v161 = vpow.pop %v160
    %v162 = vmul.f32 %v155, 1.442695
    %v163 = vpow.pop %v162
    %164 = vadd.xlane.f32.xlu0 %v157
    %v165 = vpop.xlane.xlu0 %164
    %166 = vadd.xlane.f32.xlu0 %v159
    %v167 = vpop.xlane.xlu0 %166
    %168 = vadd.xlane.f32.xlu0 %v161
    %v169 = vpop.xlane.xlu0 %168
    %170 = vadd.xlane.f32.xlu0 %v163
    %v171 = vpop.xlane.xlu0 %170
    %v172 = vlog2.pop %v165
    %v173 = vmul.f32 %v172, 0.6931472
    %v174 = vlog2.pop %v167
    %v175 = vmul.f32 %v174, 0.6931472
    %v176 = vlog2.pop %v169
    %v177 = vmul.f32 %v176, 0.6931472
    %v178 = vlog2.pop %v171
    %v179 = vmul.f32 %v178, 0.6931472
    %v180 = vadd.f32 %v173, %v145
    %v181 = vadd.f32 %v175, %v147
    %v182 = vadd.f32 %v177, %v149
    %v183 = vadd.f32 %v179, %v151
    %v184 = vsub.f32 %v180, %v137
    %v185 = vsub.f32 %v181, %v139
    %v186 = vsub.f32 %v182, %v141
    %v187 = vsub.f32 %v183, %v143
    %v188 = vadd.f32 %v184, 0.0
    %v189 = vadd.f32 %v185, 0.0
    %v190 = vadd.f32 %v186, 0.0
    %v191 = vadd.f32 %v187, 0.0
    %v192 = vrcp.pop %v165
    %v193 = vrcp.pop %v167
    %v194 = vrcp.pop %v169
    %v195 = vrcp.pop %v171
    %v196 = vmul.f32 %v157, %v157
    %v197 = vmul.f32 %v159, %v159
    %v198 = vmul.f32 %v161, %v161
    %v199 = vmul.f32 %v163, %v163
    %200 = vadd.xlane.f32.xlu0 %v196
    %v201 = vpop.xlane.xlu0 %200
    %202 = vadd.xlane.f32.xlu0 %v197
    %v203 = vpop.xlane.xlu0 %202
    %204 = vadd.xlane.f32.xlu0 %v198
    %v205 = vpop.xlane.xlu0 %204
    %206 = vadd.xlane.f32.xlu0 %v199
    %v207 = vpop.xlane.xlu0 %206
    %v208 = vsub.f32 %v137, %v145
    %v209 = vsub.f32 %v139, %v147
    %v210 = vsub.f32 %v141, %v149
    %v211 = vsub.f32 %v143, %v151
    %v212 = vmul.f32 %v208, 1.442695
    %v213 = vpow.pop %v212
    %v214 = vmul.f32 %v209, 1.442695
    %v215 = vpow.pop %v214
    %v216 = vmul.f32 %v210, 1.442695
    %v217 = vpow.pop %v216
    %v218 = vmul.f32 %v211, 1.442695
    %v219 = vpow.pop %v218
    %v220 = vmul.f32 %v213, %v192
    %v221 = vmul.f32 %v215, %v193
    %v222 = vmul.f32 %v217, %v194
    %v223 = vmul.f32 %v219, %v195
    %v224 = vmul.f32 %v201, %v192
    %v225 = vmul.f32 %v203, %v193
    %v226 = vmul.f32 %v205, %v194
    %v227 = vmul.f32 %v207, %v195
    %v228 = vmul.f32 %v224, %v192
    %v229 = vmul.f32 %v225, %v193
    %v230 = vmul.f32 %v226, %v194
    %v231 = vmul.f32 %v227, %v195
    %v232 = vmul.f32 %v220, 2.0
    %v233 = vmul.f32 %v221, 2.0
    %v234 = vmul.f32 %v222, 2.0
    %v235 = vmul.f32 %v223, 2.0
    %v236 = vsub.f32 %v228, %v232
    %v237 = vsub.f32 %v229, %v233
    %v238 = vsub.f32 %v230, %v234
    %v239 = vsub.f32 %v231, %v235
    %v240 = vadd.f32 %v236, 1.0
    %v241 = vadd.f32 %v237, 1.0
    %v242 = vadd.f32 %v238, 1.0
    %v243 = vadd.f32 %v239, 1.0
    %v244 = vmul.f32 %v240, 0.5
    %v245 = vmul.f32 %v241, 0.5
    %v246 = vmul.f32 %v242, 0.5
    %v247 = vmul.f32 %v243, 0.5
    %v248 = vadd.f32 %v188, %v244
    %v249 = vadd.f32 %v189, %v245
    %v250 = vadd.f32 %v190, %v246
    %v251 = vadd.f32 %v191, %v247
    %s252 = sadd.s32 0, 0
    %s253 = smul.u32 %s252, 32
    %v254 = vlaneseq
    %v255 = vshrl.u32 %v254, 7
    %v256 = vadd.s32 %v255, 8
    %v257 = vadd.s32 %v255, 16
    %v258 = vadd.s32 %v255, 24
    %v259 = vstv %s253
    %v260 = vadd.s32 %v259, %v255
    %v261 = vadd.s32 %v259, %v256
    %v262 = vadd.s32 %v259, %v257
    %v263 = vadd.s32 %v259, %v258
    %vm264 = vcmp.lt.s32.totalorder %v260, 20
    %vm265 = vcmp.lt.s32.totalorder %v261, 20
    %vm266 = vcmp.lt.s32.totalorder %v262, 20
    %vm267 = vcmp.lt.s32.totalorder %v263, 20
    %v268 = vsel %vm264, %v248, 0.0
    %v269 = vsel %vm265, %v249, 0.0
    %v270 = vsel %vm266, %v250, 0.0
    %v271 = vsel %vm267, %v251, 0.0
    %v272 = vld [vmem:[#allocation2] sm:$0x1]
    %vm273 = vcmask 7168
    %v274 = vsel %vm273, %v268, 0.0
    %v275 = vsel %vm273, %v269, 0.0
    %v276 = vadd.f32 %v274, %v275
    %v277 = vsel %vm273, %v270, 0.0
    %v278 = vadd.f32 %v276, %v277
    %v279 = vsel %vm273, %v271, 0.0
    %v280 = vadd.f32 %v278, %v279
    %281 = vadd.xlane.f32.xlu0 %v280
    %v282 = vpop.xlane.xlu0 %281
    %v283 = vrot.slane %v282, 4
    %v284 = vadd.f32 %v282, %v283
    %v285 = vrot.slane %v284, 2
    %v286 = vadd.f32 %v284, %v285
    %v287 = vrot.slane %v286, 1
    %v288 = vadd.f32 %v286, %v287
    %s289 = vtos %v288
    %v290 = vstv %s289
    %v291 = vadd.f32 %v272, %v290
    %vm292 = vcmask 0
    %293 = vst.msk [vmem:[#allocation2] sm:$0x1] %vm292, %v291
    // Predicated region
    $region14: #{tpu_custom_call.1} parent=1 // pred_check
      _
    $region15: #{tpu_custom_call.1} parent=1 // pred_check_branch
      %295 = sbr.rel (0) target = $region17
    $region16: #{tpu_custom_call.1} parent=1 // pred_region
      %s297 = ssub.s32 16, 16
      %298 = vsyncadd [#allocation3], %s297
      %s300 = sshll.u32 [#allocation2], 4
      %s301 = int_to_ptr.vmem [resolvable:$true] %s300
      %303 = dma.vmem_to_hbm [thread:$0]  %s301, 16, %s2, [#allocation3]
    $region17: #{tpu_custom_call.1} parent=1 // pred_fallthru
      _
    // Predicated region
    $region18: #{tpu_custom_call.1} parent=1 // pred_check
      _
    $region19: #{tpu_custom_call.1} parent=1 // pred_check_branch
      %305 = sbr.rel (0) target = $region21
    $region20: #{tpu_custom_call.1} parent=1 // pred_region
      %306 = dma.done [#allocation3], 16
    $region21: #{tpu_custom_call.1} parent=1 // pred_fallthru
      _
    %307 = vsyncpa [#allocation3], 1

</llo_original>
